<compile_context>
chip_gen: v7x
topology: tpu7x:2x2x1
jax: 0.10.0
libtpu: 0.0.40
codegen_flags: <defaults>
</compile_context>

<pallas_src>
import math

import jax
import jax.numpy as jnp
from jax.experimental import pallas as pl
from jax.experimental.pallas import tpu as pltpu


def _make_gc2d_block_kernel(img_h, img_w, neg_inv_2s2, assume_binary_target):
    def kernel(x_ref, t_ref, o_ref):
        x = x_ref[...].astype(jnp.float32)      # (rows, cols)
        t = t_ref[...].astype(jnp.float32)
        rows, cols = x.shape

        # ---- region term partial: sum of per-pixel BCE log terms (mean in wrapper)
        if assume_binary_target:
            picked = jnp.where(t >= 0.5, x, 1.0 - x)
            bce_sum = jnp.sum(jnp.maximum(jnp.log(picked), -100.0))
        else:
            log_x = jnp.maximum(jnp.log(x), -100.0)
            log_1mx = jnp.maximum(jnp.log(1.0 - x), -100.0)
            bce_sum = jnp.sum(t * log_x + (1.0 - t) * log_1mx)

        # ---- validity masks: skinny (rows,1)/(1,cols) 0/1 vectors, broadcast below.
        # pltpu.roll matches jnp.roll: roll(a, 1, axis)[i] == a[i-1].  A (i, i-1)
        # pair stays inside one image iff the image-local index of i is != 0, and a
        # (i, i+1) pair iff it is != size-1.  Local indices are recovered with an
        # exact f32 floor-divide (exact for indices far below 4e6).
        def local_index(n, period, axis):
            shape = (n, 1) if axis == 0 else (1, n)
            idx = jax.lax.broadcasted_iota(jnp.int32, shape, axis).astype(jnp.float32)
            grp = jnp.floor((idx + 0.5) * (1.0 / period))
            return idx - grp * float(period)

        r_loc = local_index(rows, img_h, 0)                           # (rows, 1)
        c_loc = local_index(cols, img_w, 1)                           # (1, cols)
        valid_r = (r_loc > 0.5).astype(jnp.float32)                   # up-neighbour ok
        valid_cp = (c_loc > 0.5).astype(jnp.float32)                  # left-neighbour ok
        valid_cm = (c_loc < float(img_w) - 1.5).astype(jnp.float32)   # right-neighbour ok

        # ---- neighbour shifts via XLU rolls (wrap / cross-image pairs masked out)
        x_u = pltpu.roll(x, shift=1, axis=0)             # x[i-1, j]
        t_u = pltpu.roll(t, shift=1, axis=0)
        x_l = pltpu.roll(x, shift=1, axis=1)             # x[i, j-1]
        t_l = pltpu.roll(t, shift=1, axis=1)
        x_d1 = pltpu.roll(x_u, shift=1, axis=1)          # x[i-1, j-1]
        t_d1 = pltpu.roll(t_u, shift=1, axis=1)
        x_d2 = pltpu.roll(x_u, shift=cols - 1, axis=1)   # x[i-1, j+1]
        t_d2 = pltpu.roll(t_u, shift=cols - 1, axis=1)

        def direction(x_n, t_n, mask):
            # 1/dist and /4 are hoisted to the wrapper's final combine.
            if assume_binary_target:
                dt = (t != t_n).astype(jnp.float32) * mask
            else:
                dt = jnp.abs(t - t_n) * mask
            di = x - x_n
            aff = jnp.exp(di * di * neg_inv_2s2)
            return jnp.sum(aff * dt), jnp.sum(dt)

        nv, dv = direction(x_u, t_u, valid_r)
        nh, dh = direction(x_l, t_l, valid_cp)
        n1, d1 = direction(x_d1, t_d1, valid_r * valid_cp)
        n2, d2 = direction(x_d2, t_d2, valid_r * valid_cm)

        # ---- emit the 9 partial sums as one dense (8, 128) tile
        lane = jax.lax.broadcasted_iota(jnp.int32, (8, 128), 1)
        tile = jnp.zeros((8, 128), jnp.float32)
        for k, val in enumerate((bce_sum, nv, dv, nh, dh, n1, d1, n2, d2)):
            tile = jnp.where(lane == k, val, tile)
        o_ref[0] = tile

    return kernel


def _pick_kw(nc, w):
    """How many images to pack side-by-side along the 128-lane axis."""
    if w >= 128:
        return 1
    cands = {1, max(1, 128 // w), 128 // math.gcd(w, 128)}
    def cost(k):   # ~ vreg-rows of work incl. dummy-image and lane padding
        return pl.cdiv(nc, k) * pl.cdiv(k * w, 128)
    return min(cands, key=lambda k: (cost(k), k))


def _pick_block(groups, h, per_group_bytes, block_bytes):
    """Whole image-groups per grid block: minimise padding, prefer >= 2 grid steps."""
    m = 8 // math.gcd(h, 8)                     # smallest bpb with (bpb*h) % 8 == 0
    budget = max(1, block_bytes // max(per_group_bytes, 1))
    bpb_max = max(m, (budget // m) * m)
    bpb_max = min(bpb_max, pl.cdiv(groups, m) * m)
    best_key, best = None, None
    for bpb in range(m, bpb_max + 1, m):
        gpad = pl.cdiv(groups, bpb) * bpb
        nblk = gpad // bpb
        key = (gpad, 0 if nblk >= 2 else 1, nblk)   # min padded work, >=2 steps, few steps
        if best_key is None or key < best_key:
            best_key, best = key, (bpb, gpad)
    return best


def gc_2d_original_loss(inp, tgt, lmda, sigma, *,
                        block_bytes=1 << 20, assume_binary_target=False):
    """Graph-cuts loss of GC_2D_Original.  inp, tgt: (N, C, H, W); inp in (0, 1)."""
    n, c, h, w = inp.shape
    nc = n * c
    elems = nc * h * w

    kw = _pick_kw(nc, w)
    wp = kw * w
    groups = pl.cdiv(nc, kw)
    itemsize = max(inp.dtype.itemsize, tgt.dtype.itemsize)
    bpb, groups_pad = _pick_block(groups, h, 2 * h * wp * itemsize, block_bytes)
    nc_pad = groups_pad * kw
    block_rows = bpb * h
    num_blocks = groups_pad // bpb
    # TODO(synk): a single image group larger than the block budget is still taken as
    # one block (no halo-aware H/W tiling); fine for typical segmentation sizes.

    def relayout(a):
        a = a.reshape(nc, h, w)
        if nc_pad > nc:   # dummy images (value 1) contribute 0 to every partial sum
            a = jnp.concatenate([a, jnp.ones((nc_pad - nc, h, w), a.dtype)], axis=0)
        if kw == 1:
            return a.reshape(nc_pad * h, w)
        return (a.reshape(groups_pad, kw, h, w)
                 .transpose(0, 2, 1, 3)
                 .reshape(groups_pad * h, wp))

    x2 = relayout(inp)            # input dtype preserved on the HBM path
    t2 = relayout(tgt)

    elems_pad = nc_pad * h * w
    cost = pl.CostEstimate(
        flops=45 * elems_pad,
        transcendentals=(5 if assume_binary_target else 6) * elems_pad,
        bytes_accessed=(x2.size * x2.dtype.itemsize + t2.size * t2.dtype.itemsize
                        + num_blocks * 8 * 128 * 4))

    neg_inv_2s2 = -1.0 / (2.0 * float(sigma) * float(sigma))
    partials = pl.pallas_call(
        _make_gc2d_block_kernel(h, w, neg_inv_2s2, assume_binary_target),
        grid=(num_blocks,),
        in_specs=[pl.BlockSpec((block_rows, wp), lambda i: (i, 0)),
                  pl.BlockSpec((block_rows, wp), lambda i: (i, 0))],
        out_specs=pl.BlockSpec((1, 8, 128), lambda i: (i, 0, 0)),
        out_shape=jax.ShapeDtypeStruct((num_blocks, 8, 128), jnp.float32),
        compiler_params=pltpu.CompilerParams(
            dimension_semantics=("parallel",),
            vmem_limit_bytes=32 * 1024 * 1024),
        cost_estimate=cost,
    )(x2, t2)

    # Final combine over 9 scalars: global sums first, then divide (matches the
    # PyTorch semantics, incl. 0/0 -> NaN when a direction has no transitions).
    s = partials[:, 0, :].sum(axis=0)
    bce = -s[0] / float(elems)
    inv_sqrt2 = 1.0 / (2.0 ** 0.5)
    boundary = (s[1] / s[2] + s[3] / s[4]
                + inv_sqrt2 * s[5] / s[6] + inv_sqrt2 * s[7] / s[8]) * 0.25
    return lmda * bce + boundary


def _reference_loss(inp, tgt, lmda, sigma):
    """Pure-JAX (XLA) port of the PyTorch forward, used only for validation."""
    x = inp.astype(jnp.float32)
    t = tgt.astype(jnp.float32)
    log_x = jnp.maximum(jnp.log(x), -100.0)
    log_1mx = jnp.maximum(jnp.log(1.0 - x), -100.0)
    bce = -jnp.mean(t * log_x + (1.0 - t) * log_1mx)
    s2 = 2.0 * sigma * sigma
    tv = jnp.abs(t[:, :, 1:, :] - t[:, :, :-1, :]); iv = x[:, :, 1:, :] - x[:, :, :-1, :]
    th = jnp.abs(t[:, :, :, 1:] - t[:, :, :, :-1]); ih = x[:, :, :, 1:] - x[:, :, :, :-1]
    t1 = jnp.abs(t[:, :, 1:, 1:] - t[:, :, :-1, :-1]); i1 = x[:, :, 1:, 1:] - x[:, :, :-1, :-1]
    t2 = jnp.abs(t[:, :, 1:, :-1] - t[:, :, :-1, 1:]); i2 = x[:, :, 1:, :-1] - x[:, :, :-1, 1:]

    def term(di, dt, dist):
        p = jnp.exp(-(di * di) / s2) / dist * dt
        return jnp.sum(p) / jnp.sum(dt)

    boundary = (term(iv, tv, 1.0) + term(ih, th, 1.0)
                + term(i1, t1, 2.0 ** 0.5) + term(i2, t2, 2.0 ** 0.5)) / 4.0
    return lmda * bce + boundary


if __name__ == "__main__":
    lmda, sigma = 1.5, 0.5
    key = jax.random.PRNGKey(0)
    k1, k2, k3, k4 = jax.random.split(key, 4)

    # Case 1: (2, 4, 16, 16) -> 8 images packed into one 128-lane block, 1 grid step.
    shape1 = (2, 4, 16, 16)
    x1 = jax.nn.sigmoid(jax.random.normal(k1, shape1, dtype=jnp.float32))
    t1 = (jax.random.uniform(k2, shape1) > 0.5).astype(jnp.float32)
    loss1 = gc_2d_original_loss(x1, t1, lmda, sigma)
    jax.block_until_ready(loss1)
    loss1b = gc_2d_original_loss(x1, t1, lmda, sigma, assume_binary_target=True)
    jax.block_until_ready(loss1b)
    ref1 = _reference_loss(x1, t1, lmda, sigma)

    # Case 2: (3, 2, 16, 24) -> non-pow2 width, dummy-image padding, 2-step parallel grid.
    shape2 = (3, 2, 16, 24)
    x2 = jax.nn.sigmoid(jax.random.normal(k3, shape2, dtype=jnp.float32))
    t2 = (jax.random.uniform(k4, shape2) > 0.5).astype(jnp.float32)
    loss2 = gc_2d_original_loss(x2, t2, lmda, sigma)
    jax.block_until_ready(loss2)
    ref2 = _reference_loss(x2, t2, lmda, sigma)

    ok = (jnp.allclose(loss1, ref1, rtol=3e-4, atol=1e-5)
          and jnp.allclose(loss1b, ref1, rtol=3e-4, atol=1e-5)
          and jnp.allclose(loss2, ref2, rtol=3e-4, atol=1e-5))
    if not bool(ok):
        raise SystemExit(
            f"FAIL: case1={loss1}, case1_binary={loss1b}, ref1={ref1}; "
            f"case2={loss2}, ref2={ref2}")
    print("KERNEL_OK")
</pallas_src>

<mosaic_0001>
module attributes {stable_mosaic.version = 11 : i64} {
  func.func @kernel(%arg0: i32, %arg1: memref<16x128xf32, #tpu.memory_space<vmem>>, %arg2: memref<16x128xf32, #tpu.memory_space<vmem>>, %arg3: memref<1x8x128xf32, #tpu.memory_space<vmem>>) attributes {dimension_semantics = [#tpu.dimension_semantics<parallel>], iteration_bounds = array<i64: 1>, scalar_prefetch = 0 : i64, scratch_operands = 0 : i64, tpu.core_type = #tpu.core_type<tc>, window_params = [{transform_indices = @transform_0, window_bounds = array<i64: 16, 128>}, {transform_indices = @transform_1, window_bounds = array<i64: 16, 128>}, {transform_indices = @transform_2, window_bounds = array<i64: 1, 8, 128>}]} {
    %c0 = arith.constant 0 : index
    %c0_0 = arith.constant 0 : index
    %0 = vector.load %arg1[%c0, %c0_0] : memref<16x128xf32, #tpu.memory_space<vmem>>, vector<16x128xf32>
    %c0_1 = arith.constant 0 : index
    %c0_2 = arith.constant 0 : index
    %1 = vector.load %arg2[%c0_1, %c0_2] : memref<16x128xf32, #tpu.memory_space<vmem>>, vector<16x128xf32>
    %2 = math.log %0 : vector<16x128xf32>
    %cst = arith.constant -1.000000e+02 : f32
    %3 = vector.broadcast %cst : f32 to vector<16x128xf32>
    %4 = arith.maximumf %2, %3 : vector<16x128xf32>
    %cst_3 = arith.constant 1.000000e+00 : f32
    %5 = vector.broadcast %cst_3 : f32 to vector<16x128xf32>
    %6 = arith.subf %5, %0 : vector<16x128xf32>
    %7 = math.log %6 : vector<16x128xf32>
    %cst_4 = arith.constant -1.000000e+02 : f32
    %8 = vector.broadcast %cst_4 : f32 to vector<16x128xf32>
    %9 = arith.maximumf %7, %8 : vector<16x128xf32>
    %10 = arith.mulf %1, %4 : vector<16x128xf32>
    %cst_5 = arith.constant 1.000000e+00 : f32
    %11 = vector.broadcast %cst_5 : f32 to vector<16x128xf32>
    %12 = arith.subf %11, %1 : vector<16x128xf32>
    %13 = arith.mulf %12, %9 : vector<16x128xf32>
    %14 = arith.addf %10, %13 : vector<16x128xf32>
    %15 = vector.shape_cast %14 : vector<16x128xf32> to vector<1x16x128xf32>
    %cst_6 = arith.constant dense<0.000000e+00> : vector<1xf32>
    %16 = vector.multi_reduction <add>, %15, %cst_6 [1, 2] : vector<1x16x128xf32> to vector<1xf32>
    %17 = vector.shape_cast %16 : vector<1xf32> to vector<1x1x1xf32>
    %18 = vector.extract %17[0, 0, 0] : f32 from vector<1x1x1xf32>
    %19 = tpu.iota {dimensions = array<i32: 0>} : vector<16x1xi32>
    %20 = arith.sitofp %19 : vector<16x1xi32> to vector<16x1xf32>
    %cst_7 = arith.constant 5.000000e-01 : f32
    %21 = vector.broadcast %cst_7 : f32 to vector<16x1xf32>
    %22 = arith.addf %20, %21 : vector<16x1xf32>
    %cst_8 = arith.constant 6.250000e-02 : f32
    %23 = vector.broadcast %cst_8 : f32 to vector<16x1xf32>
    %24 = arith.mulf %22, %23 : vector<16x1xf32>
    %25 = math.floor %24 : vector<16x1xf32>
    %cst_9 = arith.constant 1.600000e+01 : f32
    %26 = vector.broadcast %cst_9 : f32 to vector<16x1xf32>
    %27 = arith.mulf %25, %26 : vector<16x1xf32>
    %28 = arith.subf %20, %27 : vector<16x1xf32>
    %29 = tpu.iota {dimensions = array<i32: 1>} : vector<1x128xi32>
    %30 = arith.sitofp %29 : vector<1x128xi32> to vector<1x128xf32>
    %cst_10 = arith.constant 5.000000e-01 : f32
    %31 = vector.broadcast %cst_10 : f32 to vector<1x128xf32>
    %32 = arith.addf %30, %31 : vector<1x128xf32>
    %cst_11 = arith.constant 6.250000e-02 : f32
    %33 = vector.broadcast %cst_11 : f32 to vector<1x128xf32>
    %34 = arith.mulf %32, %33 : vector<1x128xf32>
    %35 = math.floor %34 : vector<1x128xf32>
    %cst_12 = arith.constant 1.600000e+01 : f32
    %36 = vector.broadcast %cst_12 : f32 to vector<1x128xf32>
    %37 = arith.mulf %35, %36 : vector<1x128xf32>
    %38 = arith.subf %30, %37 : vector<1x128xf32>
    %cst_13 = arith.constant 5.000000e-01 : f32
    %39 = vector.broadcast %cst_13 : f32 to vector<16x1xf32>
    %40 = arith.cmpf ogt, %28, %39 : vector<16x1xf32>
    %41 = arith.extui %40 : vector<16x1xi1> to vector<16x1xi32>
    %42 = arith.sitofp %41 : vector<16x1xi32> to vector<16x1xf32>
    %cst_14 = arith.constant 5.000000e-01 : f32
    %43 = vector.broadcast %cst_14 : f32 to vector<1x128xf32>
    %44 = arith.cmpf ogt, %38, %43 : vector<1x128xf32>
    %45 = arith.extui %44 : vector<1x128xi1> to vector<1x128xi32>
    %46 = arith.sitofp %45 : vector<1x128xi32> to vector<1x128xf32>
    %cst_15 = arith.constant 1.450000e+01 : f32
    %47 = vector.broadcast %cst_15 : f32 to vector<1x128xf32>
    %48 = arith.cmpf olt, %38, %47 : vector<1x128xf32>
    %49 = arith.extui %48 : vector<1x128xi1> to vector<1x128xi32>
    %50 = arith.sitofp %49 : vector<1x128xi32> to vector<1x128xf32>
    %c1_i32 = arith.constant 1 : i32
    %51 = tpu.dynamic_rotate %0 by %c1_i32 dim 0 : vector<16x128xf32>, i32 -> vector<16x128xf32>
    %c1_i32_16 = arith.constant 1 : i32
    %52 = tpu.dynamic_rotate %1 by %c1_i32_16 dim 0 : vector<16x128xf32>, i32 -> vector<16x128xf32>
    %c1_i32_17 = arith.constant 1 : i32
    %53 = tpu.dynamic_rotate %0 by %c1_i32_17 dim 1 : vector<16x128xf32>, i32 -> vector<16x128xf32>
    %c1_i32_18 = arith.constant 1 : i32
    %54 = tpu.dynamic_rotate %1 by %c1_i32_18 dim 1 : vector<16x128xf32>, i32 -> vector<16x128xf32>
    %c1_i32_19 = arith.constant 1 : i32
    %55 = tpu.dynamic_rotate %51 by %c1_i32_19 dim 1 : vector<16x128xf32>, i32 -> vector<16x128xf32>
    %c1_i32_20 = arith.constant 1 : i32
    %56 = tpu.dynamic_rotate %52 by %c1_i32_20 dim 1 : vector<16x128xf32>, i32 -> vector<16x128xf32>
    %c127_i32 = arith.constant 127 : i32
    %57 = tpu.dynamic_rotate %51 by %c127_i32 dim 1 : vector<16x128xf32>, i32 -> vector<16x128xf32>
    %c127_i32_21 = arith.constant 127 : i32
    %58 = tpu.dynamic_rotate %52 by %c127_i32_21 dim 1 : vector<16x128xf32>, i32 -> vector<16x128xf32>
    %59 = arith.subf %1, %52 : vector<16x128xf32>
    %60 = math.absf %59 : vector<16x128xf32>
    %61 = vector.broadcast %42 : vector<16x1xf32> to vector<16x128xf32>
    %62 = arith.mulf %60, %61 : vector<16x128xf32>
    %63 = arith.subf %0, %51 : vector<16x128xf32>
    %64 = arith.mulf %63, %63 : vector<16x128xf32>
    %cst_22 = arith.constant -2.000000e+00 : f32
    %65 = vector.broadcast %cst_22 : f32 to vector<16x128xf32>
    %66 = arith.mulf %64, %65 : vector<16x128xf32>
    %67 = math.exp %66 : vector<16x128xf32>
    %68 = arith.mulf %67, %62 : vector<16x128xf32>
    %69 = vector.shape_cast %68 : vector<16x128xf32> to vector<1x16x128xf32>
    %cst_23 = arith.constant dense<0.000000e+00> : vector<1xf32>
    %70 = vector.multi_reduction <add>, %69, %cst_23 [1, 2] : vector<1x16x128xf32> to vector<1xf32>
    %71 = vector.shape_cast %70 : vector<1xf32> to vector<1x1x1xf32>
    %72 = vector.extract %71[0, 0, 0] : f32 from vector<1x1x1xf32>
    %73 = vector.shape_cast %62 : vector<16x128xf32> to vector<1x16x128xf32>
    %cst_24 = arith.constant dense<0.000000e+00> : vector<1xf32>
    %74 = vector.multi_reduction <add>, %73, %cst_24 [1, 2] : vector<1x16x128xf32> to vector<1xf32>
    %75 = vector.shape_cast %74 : vector<1xf32> to vector<1x1x1xf32>
    %76 = vector.extract %75[0, 0, 0] : f32 from vector<1x1x1xf32>
    %77 = arith.subf %1, %54 : vector<16x128xf32>
    %78 = math.absf %77 : vector<16x128xf32>
    %79 = vector.broadcast %46 : vector<1x128xf32> to vector<16x128xf32>
    %80 = arith.mulf %78, %79 : vector<16x128xf32>
    %81 = arith.subf %0, %53 : vector<16x128xf32>
    %82 = arith.mulf %81, %81 : vector<16x128xf32>
    %cst_25 = arith.constant -2.000000e+00 : f32
    %83 = vector.broadcast %cst_25 : f32 to vector<16x128xf32>
    %84 = arith.mulf %82, %83 : vector<16x128xf32>
    %85 = math.exp %84 : vector<16x128xf32>
    %86 = arith.mulf %85, %80 : vector<16x128xf32>
    %87 = vector.shape_cast %86 : vector<16x128xf32> to vector<1x16x128xf32>
    %cst_26 = arith.constant dense<0.000000e+00> : vector<1xf32>
    %88 = vector.multi_reduction <add>, %87, %cst_26 [1, 2] : vector<1x16x128xf32> to vector<1xf32>
    %89 = vector.shape_cast %88 : vector<1xf32> to vector<1x1x1xf32>
    %90 = vector.extract %89[0, 0, 0] : f32 from vector<1x1x1xf32>
    %91 = vector.shape_cast %80 : vector<16x128xf32> to vector<1x16x128xf32>
    %cst_27 = arith.constant dense<0.000000e+00> : vector<1xf32>
    %92 = vector.multi_reduction <add>, %91, %cst_27 [1, 2] : vector<1x16x128xf32> to vector<1xf32>
    %93 = vector.shape_cast %92 : vector<1xf32> to vector<1x1x1xf32>
    %94 = vector.extract %93[0, 0, 0] : f32 from vector<1x1x1xf32>
    %95 = vector.broadcast %42 : vector<16x1xf32> to vector<16x128xf32>
    %96 = vector.broadcast %46 : vector<1x128xf32> to vector<16x128xf32>
    %97 = arith.mulf %95, %96 : vector<16x128xf32>
    %98 = arith.subf %1, %56 : vector<16x128xf32>
    %99 = math.absf %98 : vector<16x128xf32>
    %100 = arith.mulf %99, %97 : vector<16x128xf32>
    %101 = arith.subf %0, %55 : vector<16x128xf32>
    %102 = arith.mulf %101, %101 : vector<16x128xf32>
    %cst_28 = arith.constant -2.000000e+00 : f32
    %103 = vector.broadcast %cst_28 : f32 to vector<16x128xf32>
    %104 = arith.mulf %102, %103 : vector<16x128xf32>
    %105 = math.exp %104 : vector<16x128xf32>
    %106 = arith.mulf %105, %100 : vector<16x128xf32>
    %107 = vector.shape_cast %106 : vector<16x128xf32> to vector<1x16x128xf32>
    %cst_29 = arith.constant dense<0.000000e+00> : vector<1xf32>
    %108 = vector.multi_reduction <add>, %107, %cst_29 [1, 2] : vector<1x16x128xf32> to vector<1xf32>
    %109 = vector.shape_cast %108 : vector<1xf32> to vector<1x1x1xf32>
    %110 = vector.extract %109[0, 0, 0] : f32 from vector<1x1x1xf32>
    %111 = vector.shape_cast %100 : vector<16x128xf32> to vector<1x16x128xf32>
    %cst_30 = arith.constant dense<0.000000e+00> : vector<1xf32>
    %112 = vector.multi_reduction <add>, %111, %cst_30 [1, 2] : vector<1x16x128xf32> to vector<1xf32>
    %113 = vector.shape_cast %112 : vector<1xf32> to vector<1x1x1xf32>
    %114 = vector.extract %113[0, 0, 0] : f32 from vector<1x1x1xf32>
    %115 = vector.broadcast %42 : vector<16x1xf32> to vector<16x128xf32>
    %116 = vector.broadcast %50 : vector<1x128xf32> to vector<16x128xf32>
    %117 = arith.mulf %115, %116 : vector<16x128xf32>
    %118 = arith.subf %1, %58 : vector<16x128xf32>
    %119 = math.absf %118 : vector<16x128xf32>
    %120 = arith.mulf %119, %117 : vector<16x128xf32>
    %121 = arith.subf %0, %57 : vector<16x128xf32>
    %122 = arith.mulf %121, %121 : vector<16x128xf32>
    %cst_31 = arith.constant -2.000000e+00 : f32
    %123 = vector.broadcast %cst_31 : f32 to vector<16x128xf32>
    %124 = arith.mulf %122, %123 : vector<16x128xf32>
    %125 = math.exp %124 : vector<16x128xf32>
    %126 = arith.mulf %125, %120 : vector<16x128xf32>
    %127 = vector.shape_cast %126 : vector<16x128xf32> to vector<1x16x128xf32>
    %cst_32 = arith.constant dense<0.000000e+00> : vector<1xf32>
    %128 = vector.multi_reduction <add>, %127, %cst_32 [1, 2] : vector<1x16x128xf32> to vector<1xf32>
    %129 = vector.shape_cast %128 : vector<1xf32> to vector<1x1x1xf32>
    %130 = vector.extract %129[0, 0, 0] : f32 from vector<1x1x1xf32>
    %131 = vector.shape_cast %120 : vector<16x128xf32> to vector<1x16x128xf32>
    %cst_33 = arith.constant dense<0.000000e+00> : vector<1xf32>
    %132 = vector.multi_reduction <add>, %131, %cst_33 [1, 2] : vector<1x16x128xf32> to vector<1xf32>
    %133 = vector.shape_cast %132 : vector<1xf32> to vector<1x1x1xf32>
    %134 = vector.extract %133[0, 0, 0] : f32 from vector<1x1x1xf32>
    %135 = tpu.iota {dimensions = array<i32: 1>} : vector<8x128xi32>
    %cst_34 = arith.constant 0.000000e+00 : f32
    %136 = vector.broadcast %cst_34 : f32 to vector<8x128xf32>
    %c0_i32 = arith.constant 0 : i32
    %137 = vector.broadcast %c0_i32 : i32 to vector<8x128xi32>
    %138 = arith.cmpi eq, %135, %137 : vector<8x128xi32>
    %139 = vector.broadcast %18 : f32 to vector<8x128xf32>
    %140 = arith.select %138, %139, %136 : vector<8x128xi1>, vector<8x128xf32>
    %c1_i32_35 = arith.constant 1 : i32
    %141 = vector.broadcast %c1_i32_35 : i32 to vector<8x128xi32>
    %142 = arith.cmpi eq, %135, %141 : vector<8x128xi32>
    %143 = vector.broadcast %72 : f32 to vector<8x128xf32>
    %144 = arith.select %142, %143, %140 : vector<8x128xi1>, vector<8x128xf32>
    %c2_i32 = arith.constant 2 : i32
    %145 = vector.broadcast %c2_i32 : i32 to vector<8x128xi32>
    %146 = arith.cmpi eq, %135, %145 : vector<8x128xi32>
    %147 = vector.broadcast %76 : f32 to vector<8x128xf32>
    %148 = arith.select %146, %147, %144 : vector<8x128xi1>, vector<8x128xf32>
    %c3_i32 = arith.constant 3 : i32
    %149 = vector.broadcast %c3_i32 : i32 to vector<8x128xi32>
    %150 = arith.cmpi eq, %135, %149 : vector<8x128xi32>
    %151 = vector.broadcast %90 : f32 to vector<8x128xf32>
    %152 = arith.select %150, %151, %148 : vector<8x128xi1>, vector<8x128xf32>
    %c4_i32 = arith.constant 4 : i32
    %153 = vector.broadcast %c4_i32 : i32 to vector<8x128xi32>
    %154 = arith.cmpi eq, %135, %153 : vector<8x128xi32>
    %155 = vector.broadcast %94 : f32 to vector<8x128xf32>
    %156 = arith.select %154, %155, %152 : vector<8x128xi1>, vector<8x128xf32>
    %c5_i32 = arith.constant 5 : i32
    %157 = vector.broadcast %c5_i32 : i32 to vector<8x128xi32>
    %158 = arith.cmpi eq, %135, %157 : vector<8x128xi32>
    %159 = vector.broadcast %110 : f32 to vector<8x128xf32>
    %160 = arith.select %158, %159, %156 : vector<8x128xi1>, vector<8x128xf32>
    %c6_i32 = arith.constant 6 : i32
    %161 = vector.broadcast %c6_i32 : i32 to vector<8x128xi32>
    %162 = arith.cmpi eq, %135, %161 : vector<8x128xi32>
    %163 = vector.broadcast %114 : f32 to vector<8x128xf32>
    %164 = arith.select %162, %163, %160 : vector<8x128xi1>, vector<8x128xf32>
    %c7_i32 = arith.constant 7 : i32
    %165 = vector.broadcast %c7_i32 : i32 to vector<8x128xi32>
    %166 = arith.cmpi eq, %135, %165 : vector<8x128xi32>
    %167 = vector.broadcast %130 : f32 to vector<8x128xf32>
    %168 = arith.select %166, %167, %164 : vector<8x128xi1>, vector<8x128xf32>
    %c8_i32 = arith.constant 8 : i32
    %169 = vector.broadcast %c8_i32 : i32 to vector<8x128xi32>
    %170 = arith.cmpi eq, %135, %169 : vector<8x128xi32>
    %171 = vector.broadcast %134 : f32 to vector<8x128xf32>
    %172 = arith.select %170, %171, %168 : vector<8x128xi1>, vector<8x128xf32>
    %c0_36 = arith.constant 0 : index
    %c0_37 = arith.constant 0 : index
    %c0_38 = arith.constant 0 : index
    %173 = vector.load %arg3[%c0_36, %c0_37, %c0_38] : memref<1x8x128xf32, #tpu.memory_space<vmem>>, vector<1x8x128xf32>
    %174 = vector.shape_cast %173 : vector<1x8x128xf32> to vector<8x128xf32>
    %175 = vector.shape_cast %172 : vector<8x128xf32> to vector<1x8x128xf32>
    tpu.vector_store %arg3[%c0_36, %c0_37, %c0_38], %175 {strides = array<i32>} : memref<1x8x128xf32, #tpu.memory_space<vmem>>, vector<1x8x128xf32>,
    return
  }
  func.func @transform_0(%arg0: i32) -> (i32, i32) {
    %c0_i32 = arith.constant 0 : i32
    %c0_i32_0 = arith.constant 0 : i32
    return %arg0, %c0_i32 : i32, i32
  }
  func.func @transform_1(%arg0: i32) -> (i32, i32) {
    %c0_i32 = arith.constant 0 : i32
    %c0_i32_0 = arith.constant 0 : i32
    return %arg0, %c0_i32 : i32, i32
  }
  func.func @transform_2(%arg0: i32) -> (i32, i32, i32) {
    %c0_i32 = arith.constant 0 : i32
    %c0_i32_0 = arith.constant 0 : i32
    %c0_i32_1 = arith.constant 0 : i32
    return %arg0, %c0_i32, %c0_i32_0 : i32, i32, i32
  }
}

</mosaic_0001>

<llo_original>
// kernel: tpu_custom_call.1
$region0: #{tpu_custom_call.1}
  #allocation0 [shape = 'u32[]', space=smem, size = 0x4, offset = 0x4, fixed_abs, tag = 'smem constant byte address 0x4 - core index']
  #allocation1 [shape = 'u32[144,128]{1,0:T(1,128)}', space=vmem, size = 0x12000, scoped, tag = 'internal scratch']
  %s0 = inlined_call_operand.hbm [shape: f32[16,128], index: 0, kind: input, shape index: {}]
  %s1 = inlined_call_operand.hbm [shape: f32[16,128], index: 1, kind: input, shape index: {}]
  %s2 = inlined_call_operand.hbm [shape: f32[1,8,128], index: 2, kind: output, shape index: {}]
  %s3 = sld [smem:[#allocation0]]
  $region26: #{tpu_custom_call.1} parent=0
    _
  %s5 = ssub.s32 1, %s3
  %s6 = scalar_select 0, %s5, %s3
  $region1: #{tpu_custom_call.1} parent=0
    #allocation2 [shape = 'u8[8192]{0}', space=vmem, size = 0x2000, scoped, tag = 'input window, operand 0, single buffered']
    #allocation3 [shape = 's32[1]{0}', space=sflag, size = 0x4, scoped, tag = 'scoped memory for tpu_custom_call.1']
    #allocation4 [shape = 's32[1]{0}', space=sflag, size = 0x4, scoped, tag = 'scoped memory for tpu_custom_call.1']
    #allocation5 [shape = 'u8[8192]{0}', space=vmem, size = 0x2000, scoped, tag = 'input window, operand 1, single buffered']
    #allocation6 [shape = 's32[1]{0}', space=sflag, size = 0x4, scoped, tag = 'scoped memory for tpu_custom_call.1']
    #allocation7 [shape = 'u8[4096]{0}', space=vmem, size = 0x1000, scoped, tag = 'output window, operand 0, single buffered']
    %7 = vsyncpa [#allocation3], 0
    %8 = vsyncpa [#allocation6], 0
    %9 = vsyncpa [#allocation4], 0
    // Predicated region
    $region2: #{tpu_custom_call.1} parent=1 // pred_check
      _
    $region3: #{tpu_custom_call.1} parent=1 // pred_check_branch
      %11 = sbr.rel (0) target = $region5
    $region4: #{tpu_custom_call.1} parent=1 // pred_region
      %s13 = ssub.s32 256, 256
      %14 = vsyncadd [#allocation3], %s13
      %s15 = sshll.u32 [#allocation2], 4
      %s16 = int_to_ptr.vmem [resolvable:$true] %s15
      %21 = dma.hbm_to_vmem [thread:$0]  %s0, 256, %s16, [#allocation3], 128, 128, 8
    $region5: #{tpu_custom_call.1} parent=1 // pred_fallthru
      _
    // Predicated region
    $region6: #{tpu_custom_call.1} parent=1 // pred_check
      _
    $region7: #{tpu_custom_call.1} parent=1 // pred_check_branch
      %23 = sbr.rel (0) target = $region9
    $region8: #{tpu_custom_call.1} parent=1 // pred_region
      %s25 = ssub.s32 256, 256
      %26 = vsyncadd [#allocation6], %s25
      %s27 = sshll.u32 [#allocation5], 4
      %s28 = int_to_ptr.vmem [resolvable:$true] %s27
      %33 = dma.hbm_to_vmem [thread:$0]  %s1, 256, %s28, [#allocation6], 128, 128, 8
    $region9: #{tpu_custom_call.1} parent=1 // pred_fallthru
      _
    // Predicated region
    $region10: #{tpu_custom_call.1} parent=1 // pred_check
      _
    $region11: #{tpu_custom_call.1} parent=1 // pred_check_branch
      %35 = sbr.rel (0) target = $region13
    $region12: #{tpu_custom_call.1} parent=1 // pred_region
      %36 = dma.done [#allocation3], 256
    $region13: #{tpu_custom_call.1} parent=1 // pred_fallthru
      _
    // Predicated region
    $region14: #{tpu_custom_call.1} parent=1 // pred_check
      _
    $region15: #{tpu_custom_call.1} parent=1 // pred_check_branch
      %38 = sbr.rel (0) target = $region17
    $region16: #{tpu_custom_call.1} parent=1 // pred_region
      %39 = dma.done [#allocation6], 256
    $region17: #{tpu_custom_call.1} parent=1 // pred_fallthru
      _
    %v40 = vld [vmem:[#allocation2] sm:$0xff]
    %v41 = vld [vmem:[#allocation2 + $0x8] sm:$0xff]
    %v42 = vld [vmem:[#allocation5] sm:$0xff]
    %v43 = vld [vmem:[#allocation5 + $0x8] sm:$0xff]
    %v44 = vlog2.pop %v40
    %v45 = vmul.f32 %v44, 0.6931472
    %v46 = vlog2.pop %v41
    %v47 = vmul.f32 %v46, 0.6931472
    %v48 = vmax.f32 %v45, -100.0
    %v49 = vmax.f32 %v47, -100.0
    %v50 = vsub.f32 1.0, %v40
    %v51 = vsub.f32 1.0, %v41
    %v52 = vlog2.pop %v50
    %v53 = vmul.f32 %v52, 0.6931472
    %v54 = vlog2.pop %v51
    %v55 = vmul.f32 %v54, 0.6931472
    %v56 = vmax.f32 %v53, -100.0
    %v57 = vmax.f32 %v55, -100.0
    %v58 = vmul.f32 %v42, %v48
    %v59 = vmul.f32 %v43, %v49
    %v60 = vsub.f32 1.0, %v42
    %v61 = vsub.f32 1.0, %v43
    %v62 = vmul.f32 %v60, %v56
    %v63 = vmul.f32 %v61, %v57
    %v64 = vadd.f32 %v58, %v62
    %v65 = vadd.f32 %v59, %v63
    %v66 = vadd.f32 %v64, %v65
    %67 = vadd.xlane.f32.xlu0 %v66
    %v68 = vpop.xlane.xlu0 %67
    %v69 = vrot.slane %v68, 4
    %v70 = vadd.f32 %v68, %v69
    %v71 = vrot.slane %v70, 2
    %v72 = vadd.f32 %v70, %v71
    %v73 = vrot.slane %v72, 1
    %v74 = vadd.f32 %v72, %v73
    %s75 = vtos %v74
    %v76 = vlaneseq
    %v77 = vshrl.u32 %v76, 7
    %v78 = vadd.s32 %v77, 8
    %v79 = vcvt.s32.f32 %v77
    %v80 = vcvt.s32.f32 %v78
    %v81 = vadd.f32 %v79, 0.5
    %v82 = vadd.f32 %v80, 0.5
    %v83 = vmul.f32 %v81, 0.0625
    %v84 = vmul.f32 %v82, 0.0625
    %v85 = vfloor.f32 %v83
    %v86 = vfloor.f32 %v84
    %v87 = vmul.f32 %v85, 16.0
    %v88 = vmul.f32 %v86, 16.0
    %v89 = vsub.f32 %v79, %v87
    %v90 = vsub.f32 %v80, %v88
    %v91 = vlaneseq
    %v92 = vand.u32 %v91, 127
    %v93 = vcvt.s32.f32 %v92
    %v94 = vadd.f32 %v93, 0.5
    %v95 = vmul.f32 %v94, 0.0625
    %v96 = vfloor.f32 %v95
    %v97 = vmul.f32 %v96, 16.0
    %v98 = vsub.f32 %v93, %v97
    %vm99 = vcmp.gt.f32.partialorder %v89, 0.5
    %vm100 = vcmp.gt.f32.partialorder %v90, 0.5
    %v101 = vsel %vm99, 1, 0
    %v102 = vsel %vm100, 1, 0
    %v103 = vcvt.s32.f32 %v101
    %v104 = vcvt.s32.f32 %v102
    %vm105 = vcmp.gt.f32.partialorder %v98, 0.5
    %v106 = vsel %vm105, 1, 0
    %v107 = vcvt.s32.f32 %v106
    %vm108 = vcmp.lt.f32.partialorder %v98, 14.5
    %v109 = vsel %vm108, 1, 0
    %v110 = vcvt.s32.f32 %v109
    %v111 = vrot.slane %v40, 7
    %v112 = vrot.slane %v41, 7
    %vm113 = vcmp.lt.s32.totalorder %v77, 1
    %v114 = vsel %vm113, %v111, %v112
    %v115 = vsel %vm113, %v112, %v111
    %v116 = vrot.slane %v42, 7
    %v117 = vrot.slane %v43, 7
    %v118 = vsel %vm113, %v116, %v117
    %v119 = vsel %vm113, %v117, %v116
    %120 = vrot.lane.b32.xlu0 %v40, 1
    %v121 = vpop.permute.xlu0 %120
    %122 = vrot.lane.b32.xlu0 %v41, 1
    %v123 = vpop.permute.xlu0 %122
    %124 = vrot.lane.b32.xlu0 %v42, 1
    %v125 = vpop.permute.xlu0 %124
    %126 = vrot.lane.b32.xlu0 %v43, 1
    %v127 = vpop.permute.xlu0 %126
    %128 = vrot.lane.b32.xlu0 %v115, 1
    %v129 = vpop.permute.xlu0 %128
    %130 = vrot.lane.b32.xlu0 %v114, 1
    %v131 = vpop.permute.xlu0 %130
    %132 = vrot.lane.b32.xlu0 %v119, 1
    %v133 = vpop.permute.xlu0 %132
    %134 = vrot.lane.b32.xlu0 %v118, 1
    %v135 = vpop.permute.xlu0 %134
    %136 = vrot.lane.b32.xlu0 %v115, 127
    %v137 = vpop.permute.xlu0 %136
    %138 = vrot.lane.b32.xlu0 %v114, 127
    %v139 = vpop.permute.xlu0 %138
    %140 = vrot.lane.b32.xlu0 %v119, 127
    %v141 = vpop.permute.xlu0 %140
    %142 = vrot.lane.b32.xlu0 %v118, 127
    %v143 = vpop.permute.xlu0 %142
    %v144 = vsub.f32 %v42, %v119
    %v145 = vsub.f32 %v43, %v118
    %v146 = vand.u32 2147483647, %v144
    %v147 = vand.u32 2147483647, %v145
    %v148 = vmul.f32 %v146, %v103
    %v149 = vmul.f32 %v147, %v104
    %v150 = vsub.f32 %v40, %v115
    %v151 = vsub.f32 %v41, %v114
    %v152 = vmul.f32 %v150, %v150
    %v153 = vmul.f32 %v151, %v151
    %v154 = vmul.f32 %v152, -2.0
    %v155 = vmul.f32 %v153, -2.0
    %v156 = vmul.f32 %v154, 1.442695
    %v157 = vpow.pop %v156
    %v158 = vmul.f32 %v155, 1.442695
    %v159 = vpow.pop %v158
    %v160 = vmul.f32 %v157, %v148
    %v161 = vmul.f32 %v159, %v149
    %v162 = vadd.f32 %v160, %v161
    %163 = vadd.xlane.f32.xlu0 %v162
    %v164 = vpop.xlane.xlu0 %163
    %v165 = vrot.slane %v164, 4
    %v166 = vadd.f32 %v164, %v165
    %v167 = vrot.slane %v166, 2
    %v168 = vadd.f32 %v166, %v167
    %v169 = vrot.slane %v168, 1
    %v170 = vadd.f32 %v168, %v169
    %s171 = vtos %v170
    %v172 = vadd.f32 %v148, %v149
    %173 = vadd.xlane.f32.xlu0 %v172
    %v174 = vpop.xlane.xlu0 %173
    %v175 = vrot.slane %v174, 4
    %v176 = vadd.f32 %v174, %v175
    %v177 = vrot.slane %v176, 2
    %v178 = vadd.f32 %v176, %v177
    %v179 = vrot.slane %v178, 1
    %v180 = vadd.f32 %v178, %v179
    %s181 = vtos %v180
    %v182 = vsub.f32 %v42, %v125
    %v183 = vsub.f32 %v43, %v127
    %v184 = vand.u32 2147483647, %v182
    %v185 = vand.u32 2147483647, %v183
    %v186 = vmul.f32 %v184, %v107
    %v187 = vmul.f32 %v185, %v107
    %v188 = vsub.f32 %v40, %v121
    %v189 = vsub.f32 %v41, %v123
    %v190 = vmul.f32 %v188, %v188
    %v191 = vmul.f32 %v189, %v189
    %v192 = vmul.f32 %v190, -2.0
    %v193 = vmul.f32 %v191, -2.0
    %v194 = vmul.f32 %v192, 1.442695
    %v195 = vpow.pop %v194
    %v196 = vmul.f32 %v193, 1.442695
    %v197 = vpow.pop %v196
    %v198 = vmul.f32 %v195, %v186
    %v199 = vmul.f32 %v197, %v187
    %v200 = vadd.f32 %v198, %v199
    %201 = vadd.xlane.f32.xlu0 %v200
    %v202 = vpop.xlane.xlu0 %201
    %v203 = vrot.slane %v202, 4
    %v204 = vadd.f32 %v202, %v203
    %v205 = vrot.slane %v204, 2
    %v206 = vadd.f32 %v204, %v205
    %v207 = vrot.slane %v206, 1
    %v208 = vadd.f32 %v206, %v207
    %s209 = vtos %v208
    %v210 = vadd.f32 %v186, %v187
    %211 = vadd.xlane.f32.xlu0 %v210
    %v212 = vpop.xlane.xlu0 %211
    %v213 = vrot.slane %v212, 4
    %v214 = vadd.f32 %v212, %v213
    %v215 = vrot.slane %v214, 2
    %v216 = vadd.f32 %v214, %v215
    %v217 = vrot.slane %v216, 1
    %v218 = vadd.f32 %v216, %v217
    %s219 = vtos %v218
    %v220 = vmul.f32 %v103, %v107
    %v221 = vmul.f32 %v104, %v107
    %v222 = vsub.f32 %v42, %v133
    %v223 = vsub.f32 %v43, %v135
    %v224 = vand.u32 2147483647, %v222
    %v225 = vand.u32 2147483647, %v223
    %v226 = vmul.f32 %v224, %v220
    %v227 = vmul.f32 %v225, %v221
    %v228 = vsub.f32 %v40, %v129
    %v229 = vsub.f32 %v41, %v131
    %v230 = vmul.f32 %v228, %v228
    %v231 = vmul.f32 %v229, %v229
    %v232 = vmul.f32 %v230, -2.0
    %v233 = vmul.f32 %v231, -2.0
    %v234 = vmul.f32 %v232, 1.442695
    %v235 = vpow.pop %v234
    %v236 = vmul.f32 %v233, 1.442695
    %v237 = vpow.pop %v236
    %v238 = vmul.f32 %v235, %v226
    %v239 = vmul.f32 %v237, %v227
    %v240 = vadd.f32 %v238, %v239
    %241 = vadd.xlane.f32.xlu0 %v240
    %v242 = vpop.xlane.xlu0 %241
    %v243 = vrot.slane %v242, 4
    %v244 = vadd.f32 %v242, %v243
    %v245 = vrot.slane %v244, 2
    %v246 = vadd.f32 %v244, %v245
    %v247 = vrot.slane %v246, 1
    %v248 = vadd.f32 %v246, %v247
    %s249 = vtos %v248
    %v250 = vadd.f32 %v226, %v227
    %251 = vadd.xlane.f32.xlu0 %v250
    %v252 = vpop.xlane.xlu0 %251
    %v253 = vrot.slane %v252, 4
    %v254 = vadd.f32 %v252, %v253
    %v255 = vrot.slane %v254, 2
    %v256 = vadd.f32 %v254, %v255
    %v257 = vrot.slane %v256, 1
    %v258 = vadd.f32 %v256, %v257
    %s259 = vtos %v258
    %v260 = vmul.f32 %v103, %v110
    %v261 = vmul.f32 %v104, %v110
    %v262 = vsub.f32 %v42, %v141
    %v263 = vsub.f32 %v43, %v143
    %v264 = vand.u32 2147483647, %v262
    %v265 = vand.u32 2147483647, %v263
    %v266 = vmul.f32 %v264, %v260
    %v267 = vmul.f32 %v265, %v261
    %v268 = vsub.f32 %v40, %v137
    %v269 = vsub.f32 %v41, %v139
    %v270 = vmul.f32 %v268, %v268
    %v271 = vmul.f32 %v269, %v269
    %v272 = vmul.f32 %v270, -2.0
    %v273 = vmul.f32 %v271, -2.0
    %v274 = vmul.f32 %v272, 1.442695
    %v275 = vpow.pop %v274
    %v276 = vmul.f32 %v273, 1.442695
    %v277 = vpow.pop %v276
    %v278 = vmul.f32 %v275, %v266
    %v279 = vmul.f32 %v277, %v267
    %v280 = vadd.f32 %v278, %v279
    %281 = vadd.xlane.f32.xlu0 %v280
    %v282 = vpop.xlane.xlu0 %281
    %v283 = vrot.slane %v282, 4
    %v284 = vadd.f32 %v282, %v283
    %v285 = vrot.slane %v284, 2
    %v286 = vadd.f32 %v284, %v285
    %v287 = vrot.slane %v286, 1
    %v288 = vadd.f32 %v286, %v287
    %s289 = vtos %v288
    %v290 = vadd.f32 %v266, %v267
    %291 = vadd.xlane.f32.xlu0 %v290
    %v292 = vpop.xlane.xlu0 %291
    %v293 = vrot.slane %v292, 4
    %v294 = vadd.f32 %v292, %v293
    %v295 = vrot.slane %v294, 2
    %v296 = vadd.f32 %v294, %v295
    %v297 = vrot.slane %v296, 1
    %v298 = vadd.f32 %v296, %v297
    %s299 = vtos %v298
    %vm300 = vcmp.eq.s32.totalorder %v92, 0
    %v301 = vstv %s75
    %v302 = vsel %vm300, %v301, 0.0
    %vm303 = vcmp.eq.s32.totalorder %v92, 1
    %v304 = vstv %s171
    %v305 = vsel %vm303, %v304, %v302
    %vm306 = vcmp.eq.s32.totalorder %v92, 2
    %v307 = vstv %s181
    %v308 = vsel %vm306, %v307, %v305
    %vm309 = vcmp.eq.s32.totalorder %v92, 3
    %v310 = vstv %s209
    %v311 = vsel %vm309, %v310, %v308
    %vm312 = vcmp.eq.s32.totalorder %v92, 4
    %v313 = vstv %s219
    %v314 = vsel %vm312, %v313, %v311
    %vm315 = vcmp.eq.s32.totalorder %v92, 5
    %v316 = vstv %s249
    %v317 = vsel %vm315, %v316, %v314
    %vm318 = vcmp.eq.s32.totalorder %v92, 6
    %v319 = vstv %s259
    %v320 = vsel %vm318, %v319, %v317
    %vm321 = vcmp.eq.s32.totalorder %v92, 7
    %v322 = vstv %s289
    %v323 = vsel %vm321, %v322, %v320
    %vm324 = vcmp.eq.s32.totalorder %v92, 8
    %v325 = vstv %s299
    %v326 = vsel %vm324, %v325, %v323
    %327 = vst [vmem:[#allocation7] sm:$0xff] %v326
    // Predicated region
    $region18: #{tpu_custom_call.1} parent=1 // pred_check
      _
    $region19: #{tpu_custom_call.1} parent=1 // pred_check_branch
      %329 = sbr.rel (0) target = $region21
    $region20: #{tpu_custom_call.1} parent=1 // pred_region
      %s331 = ssub.s32 128, 128
      %332 = vsyncadd [#allocation4], %s331
      %s334 = sshll.u32 [#allocation7], 4
      %s335 = int_to_ptr.vmem [resolvable:$true] %s334
      %337 = dma.vmem_to_hbm [thread:$0]  %s335, 128, %s2, [#allocation4]
    $region21: #{tpu_custom_call.1} parent=1 // pred_fallthru
      _
    // Predicated region
    $region22: #{tpu_custom_call.1} parent=1 // pred_check
      _
    $region23: #{tpu_custom_call.1} parent=1 // pred_check_branch
      %339 = sbr.rel (0) target = $region25
    $region24: #{tpu_custom_call.1} parent=1 // pred_region
      %340 = dma.done [#allocation4], 128
    $region25: #{tpu_custom_call.1} parent=1 // pred_fallthru
      _
    %341 = vsyncpa [#allocation3], 1
    %342 = vsyncpa [#allocation6], 1
    %343 = vsyncpa [#allocation4], 1

</llo_original>
